<compile_context>
chip_gen: v5e
topology: v5e:2x2
jax: 0.10.0
libtpu: 0.0.40
codegen_flags: <defaults>
</compile_context>

<pallas_src>
import functools

import jax
import jax.numpy as jnp
from jax import lax
from jax.experimental import pallas as pl
from jax.experimental.pallas import tpu as pltpu


# Tap order matches conv_w.reshape(C, 9): t = (di + 1) * 3 + (dj + 1)  (cross-correlation).
_TAPS = ((-1, -1), (-1, 0), (-1, 1),
         (0, -1),  (0, 0),  (0, 1),
         (1, -1),  (1, 0),  (1, 1))


def _frelu_kernel(x_ref, p_ref, m_ref, o_ref, *, W):
    """FReLU on a (Rb, HWp) block of flattened (n, c) spatial planes.

    x_ref: (Rb, HWp)  one row = one channel-plane of one batch element; HWp = H*W padded
                      up to a multiple of 128 (lane-dense).
    p_ref: (Rb, 10)   per-row params: lanes 0..8 = 3x3 taps * folded BN scale, lane 9 = bias.
    m_ref: (8, HWp)   precomputed 0/1 boundary masks for the 8 non-centre taps (f32),
                      resident across grid steps (constant index_map).
    o_ref: (Rb, HWp)  max(x, bn(conv(x))).
    """
    HWp = x_ref.shape[-1]
    x = x_ref[...]                       # native dtype: rolls / loads stay packed for bf16
    xf = x.astype(jnp.float32)
    P = p_ref[...]                       # (Rb, 10) float32

    # Folded bias + centre tap.
    acc = P[:, 9:10] + P[:, 4:5] * xf    # (Rb, HWp) float32

    # 8 halo taps: XLU lane-rotate + precomputed boundary mask + per-row weight FMA.
    # roll sign: shifted[p] = x[p + s]  <=>  pltpu.roll(x, shift=-s).
    # TODO(synk): if a bundle dump shows vst saturation from materialized per-tap
    # temporaries, strip-mine this loop over 8-row chunks with lax.fori_loop.
    m = 0
    for t, (di, dj) in enumerate(_TAPS):
        if di == 0 and dj == 0:
            continue
        s = di * W + dj
        shifted = pltpu.roll(x, shift=(-s) % HWp, axis=1)
        acc = acc + P[:, t:t + 1] * (shifted * m_ref[m])   # widen to f32 at the multiply
        m += 1

    o_ref[...] = jnp.maximum(xf, acc).astype(o_ref.dtype)


def _round_up(v, m):
    return -(-v // m) * m


def _pick_row_block(R8, lane_bytes, row_align, target_bytes=4 * 1024 * 1024):
    """Rows per block: a multiple of `row_align`, sized near `target_bytes` of x data,
    capped at ~half the rows so the 1-D 'parallel' grid has >= 2 steps (v7x megacore)."""
    rb = max(row_align, (target_bytes // max(lane_bytes, 1)) // row_align * row_align)
    if R8 >= 2 * row_align:
        rb = min(rb, _round_up(R8 // 2, row_align))
    return int(min(rb, R8))


def frelu_pallas(x, conv_w, conv_b, gamma, beta, running_mean, running_var, eps=1e-5):
    """x: (N, C, H, W).  conv_w: (C, 1, 3, 3) depthwise weights."""
    N, C, H, W = x.shape
    HW = H * W
    R = N * C
    f32 = jnp.float32

    # Fold conv bias + inference BN into per-channel (scale-into-weights, bias).
    scale = gamma.astype(f32) / jnp.sqrt(running_var.astype(f32) + eps)            # (C,)
    w_eff = conv_w.reshape(C, 9).astype(f32) * scale[:, None]                      # (C, 9)
    b_eff = (conv_b.astype(f32) - running_mean.astype(f32)) * scale + beta.astype(f32)

    # One packed per-row parameter table: row r = n*C + c -> channel c = r % C.
    params = jnp.tile(jnp.concatenate([w_eff, b_eff[:, None]], axis=1), (N, 1))    # (R, 10)

    # Lane-dense layout: one (n, c) spatial plane per row; pad lanes to a multiple of 128
    # and rows up to the sublane granule for the dtype.
    itemsize = jnp.dtype(x.dtype).itemsize
    row_align = {4: 8, 2: 16, 1: 32}.get(itemsize, 8)
    HWp = _round_up(HW, 128)
    R8 = _round_up(R, row_align)
    x2d = x.reshape(R, HW)
    if HWp != HW or R8 != R:
        x2d = jnp.pad(x2d, ((0, R8 - R), (0, HWp - HW)))
    if R8 != R:
        params = jnp.pad(params, ((0, R8 - R), (0, 0)))

    # Precomputed boundary masks for the 8 non-centre taps.  Padded lanes never feed a
    # real (unmasked) output position, so their mask values are irrelevant.
    lane = jnp.arange(HWp, dtype=jnp.int32)
    col, row = lane % W, lane // W
    mask_rows = []
    for di, dj in _TAPS:
        if di == 0 and dj == 0:
            continue
        ok = jnp.ones((HWp,), jnp.bool_)
        if dj == -1:
            ok = ok & (col > 0)
        if dj == 1:
            ok = ok & (col < W - 1)
        if di == -1:
            ok = ok & (row > 0)
        if di == 1:
            ok = ok & (row < H - 1)
        mask_rows.append(ok)
    masks = jnp.stack(mask_rows).astype(f32)                                       # (8, HWp)

    lane_bytes = HWp * itemsize
    Rb = _pick_row_block(R8, lane_bytes, row_align)
    grid = (pl.cdiv(R8, Rb),)
    block_bytes = Rb * lane_bytes
    # in + out double-buffered + params/masks + compiler scratch; capped below v7x's
    # 64 MiB physical VMEM (v5e/v6e have 128 MiB and are unaffected).
    vmem_limit = int(min(48 * 1024 * 1024,
                         max(32 * 1024 * 1024, 6 * block_bytes + (4 << 20))))

    kernel = functools.partial(_frelu_kernel, W=W)

    out2d = pl.pallas_call(
        kernel,
        out_shape=jax.ShapeDtypeStruct((R8, HWp), x.dtype),
        grid_spec=pltpu.PrefetchScalarGridSpec(
            num_scalar_prefetch=0,
            grid=grid,
            in_specs=[
                pl.BlockSpec((Rb, HWp), lambda r: (r, 0)),
                pl.BlockSpec((Rb, 10), lambda r: (r, 0)),
                pl.BlockSpec((8, HWp), lambda r: (0, 0)),   # resident across grid steps
            ],
            out_specs=pl.BlockSpec((Rb, HWp), lambda r: (r, 0)),
        ),
        compiler_params=pltpu.CompilerParams(
            dimension_semantics=("parallel",),
            vmem_limit_bytes=vmem_limit,
        ),
    )(x2d, params, masks)

    return out2d[:R, :HW].reshape(N, C, H, W)


def frelu_reference(x, conv_w, conv_b, gamma, beta, running_mean, running_var, eps=1e-5):
    """Pure-JAX reference matching PyTorch FReLU forward (BN in eval mode)."""
    C = x.shape[1]
    conv = lax.conv_general_dilated(
        x, conv_w,
        window_strides=(1, 1), padding=((1, 1), (1, 1)),
        dimension_numbers=("NCHW", "OIHW", "NCHW"),
        feature_group_count=C,
    ) + conv_b[None, :, None, None]
    inv = 1.0 / jnp.sqrt(running_var + eps)
    bn = (conv - running_mean[None, :, None, None]) * (gamma * inv)[None, :, None, None] \
         + beta[None, :, None, None]
    return jnp.maximum(x, bn)


if __name__ == "__main__":
    key = jax.random.PRNGKey(0)

    def make_case(case_key, N, C, H, W):
        ks = jax.random.split(case_key, 7)
        x = jax.random.normal(ks[0], (N, C, H, W), dtype=jnp.float32)
        conv_w = jax.random.normal(ks[1], (C, 1, 3, 3), dtype=jnp.float32) * 0.2
        conv_b = jax.random.normal(ks[2], (C,), dtype=jnp.float32) * 0.1
        gamma = 1.0 + 0.1 * jax.random.normal(ks[3], (C,), dtype=jnp.float32)
        beta = 0.1 * jax.random.normal(ks[4], (C,), dtype=jnp.float32)
        rm = 0.1 * jax.random.normal(ks[5], (C,), dtype=jnp.float32)
        rv = jnp.abs(jax.random.normal(ks[6], (C,), dtype=jnp.float32)) + 0.5
        return x, conv_w, conv_b, gamma, beta, rm, rv

    k1, k2 = jax.random.split(key)

    # Primary case: batch=2, channels=4, spatial=16 (H*W already a multiple of 128).
    args = make_case(k1, 2, 4, 16, 16)
    out = jax.block_until_ready(frelu_pallas(*args))
    ref = frelu_reference(*args)
    assert out.shape == (2, 4, 16, 16)
    assert jnp.allclose(out, ref, atol=1e-4, rtol=1e-4), "mismatch vs reference (16x16)"

    # Secondary case exercising lane padding (49 -> 128), row padding and a 2-step grid.
    args = make_case(k2, 2, 5, 7, 7)
    out = jax.block_until_ready(frelu_pallas(*args))
    ref = frelu_reference(*args)
    assert jnp.allclose(out, ref, atol=1e-4, rtol=1e-4), "mismatch vs reference (7x7)"

    print("KERNEL_OK")
</pallas_src>

<mosaic_0001>
module attributes {stable_mosaic.version = 11 : i64} {
  func.func @_frelu_kernel(%arg0: i32, %arg1: memref<8x256xf32, #tpu.memory_space<vmem>>, %arg2: memref<8x10xf32, #tpu.memory_space<vmem>>, %arg3: memref<8x256xf32, #tpu.memory_space<vmem>>, %arg4: memref<8x256xf32, #tpu.memory_space<vmem>>) attributes {dimension_semantics = [#tpu.dimension_semantics<parallel>], iteration_bounds = array<i64: 1>, scalar_prefetch = 0 : i64, scratch_operands = 0 : i64, tpu.core_type = #tpu.core_type<tc>, window_params = [{transform_indices = @transform_0, window_bounds = array<i64: 8, 256>}, {transform_indices = @transform_1, window_bounds = array<i64: 8, 10>}, {pipeline_mode = #tpu.pipeline_mode<synchronous>, transform_indices = @transform_2, window_bounds = array<i64: 8, 256>}, {transform_indices = @transform_3, window_bounds = array<i64: 8, 256>}]} {
    %c0 = arith.constant 0 : index
    %c0_0 = arith.constant 0 : index
    %0 = vector.load %arg1[%c0, %c0_0] : memref<8x256xf32, #tpu.memory_space<vmem>>, vector<8x256xf32>
    %c0_1 = arith.constant 0 : index
    %c0_2 = arith.constant 0 : index
    %1 = vector.load %arg2[%c0_1, %c0_2] : memref<8x10xf32, #tpu.memory_space<vmem>>, vector<8x10xf32>
    %2 = vector.extract_strided_slice %1 {offsets = [0, 9], sizes = [8, 1], strides = [1, 1]} : vector<8x10xf32> to vector<8x1xf32>
    %3 = vector.extract_strided_slice %1 {offsets = [0, 4], sizes = [8, 1], strides = [1, 1]} : vector<8x10xf32> to vector<8x1xf32>
    %4 = vector.broadcast %3 : vector<8x1xf32> to vector<8x256xf32>
    %5 = arith.mulf %4, %0 : vector<8x256xf32>
    %6 = vector.broadcast %2 : vector<8x1xf32> to vector<8x256xf32>
    %7 = arith.addf %6, %5 : vector<8x256xf32>
    %c17_i32 = arith.constant 17 : i32
    %8 = tpu.dynamic_rotate %0 by %c17_i32 dim 1 : vector<8x256xf32>, i32 -> vector<8x256xf32>
    %9 = vector.extract_strided_slice %1 {offsets = [0, 0], sizes = [8, 1], strides = [1, 1]} : vector<8x10xf32> to vector<8x1xf32>
    %c0_3 = arith.constant 0 : index
    %c0_4 = arith.constant 0 : index
    %10 = vector.load %arg3[%c0_3, %c0_4] : memref<8x256xf32, #tpu.memory_space<vmem>>, vector<1x256xf32>
    %11 = vector.shape_cast %10 : vector<1x256xf32> to vector<256xf32>
    %12 = vector.shape_cast %11 : vector<256xf32> to vector<1x256xf32>
    %13 = vector.broadcast %12 : vector<1x256xf32> to vector<8x256xf32>
    %14 = arith.mulf %8, %13 : vector<8x256xf32>
    %15 = vector.broadcast %9 : vector<8x1xf32> to vector<8x256xf32>
    %16 = arith.mulf %15, %14 : vector<8x256xf32>
    %17 = arith.addf %7, %16 : vector<8x256xf32>
    %c16_i32 = arith.constant 16 : i32
    %18 = tpu.dynamic_rotate %0 by %c16_i32 dim 1 : vector<8x256xf32>, i32 -> vector<8x256xf32>
    %19 = vector.extract_strided_slice %1 {offsets = [0, 1], sizes = [8, 1], strides = [1, 1]} : vector<8x10xf32> to vector<8x1xf32>
    %c1 = arith.constant 1 : index
    %c0_5 = arith.constant 0 : index
    %20 = vector.load %arg3[%c1, %c0_5] : memref<8x256xf32, #tpu.memory_space<vmem>>, vector<1x256xf32>
    %21 = vector.shape_cast %20 : vector<1x256xf32> to vector<256xf32>
    %22 = vector.shape_cast %21 : vector<256xf32> to vector<1x256xf32>
    %23 = vector.broadcast %22 : vector<1x256xf32> to vector<8x256xf32>
    %24 = arith.mulf %18, %23 : vector<8x256xf32>
    %25 = vector.broadcast %19 : vector<8x1xf32> to vector<8x256xf32>
    %26 = arith.mulf %25, %24 : vector<8x256xf32>
    %27 = arith.addf %17, %26 : vector<8x256xf32>
    %c15_i32 = arith.constant 15 : i32
    %28 = tpu.dynamic_rotate %0 by %c15_i32 dim 1 : vector<8x256xf32>, i32 -> vector<8x256xf32>
    %29 = vector.extract_strided_slice %1 {offsets = [0, 2], sizes = [8, 1], strides = [1, 1]} : vector<8x10xf32> to vector<8x1xf32>
    %c2 = arith.constant 2 : index
    %c0_6 = arith.constant 0 : index
    %30 = vector.load %arg3[%c2, %c0_6] : memref<8x256xf32, #tpu.memory_space<vmem>>, vector<1x256xf32>
    %31 = vector.shape_cast %30 : vector<1x256xf32> to vector<256xf32>
    %32 = vector.shape_cast %31 : vector<256xf32> to vector<1x256xf32>
    %33 = vector.broadcast %32 : vector<1x256xf32> to vector<8x256xf32>
    %34 = arith.mulf %28, %33 : vector<8x256xf32>
    %35 = vector.broadcast %29 : vector<8x1xf32> to vector<8x256xf32>
    %36 = arith.mulf %35, %34 : vector<8x256xf32>
    %37 = arith.addf %27, %36 : vector<8x256xf32>
    %c1_i32 = arith.constant 1 : i32
    %38 = tpu.dynamic_rotate %0 by %c1_i32 dim 1 : vector<8x256xf32>, i32 -> vector<8x256xf32>
    %39 = vector.extract_strided_slice %1 {offsets = [0, 3], sizes = [8, 1], strides = [1, 1]} : vector<8x10xf32> to vector<8x1xf32>
    %c3 = arith.constant 3 : index
    %c0_7 = arith.constant 0 : index
    %40 = vector.load %arg3[%c3, %c0_7] : memref<8x256xf32, #tpu.memory_space<vmem>>, vector<1x256xf32>
    %41 = vector.shape_cast %40 : vector<1x256xf32> to vector<256xf32>
    %42 = vector.shape_cast %41 : vector<256xf32> to vector<1x256xf32>
    %43 = vector.broadcast %42 : vector<1x256xf32> to vector<8x256xf32>
    %44 = arith.mulf %38, %43 : vector<8x256xf32>
    %45 = vector.broadcast %39 : vector<8x1xf32> to vector<8x256xf32>
    %46 = arith.mulf %45, %44 : vector<8x256xf32>
    %47 = arith.addf %37, %46 : vector<8x256xf32>
    %c255_i32 = arith.constant 255 : i32
    %48 = tpu.dynamic_rotate %0 by %c255_i32 dim 1 : vector<8x256xf32>, i32 -> vector<8x256xf32>
    %49 = vector.extract_strided_slice %1 {offsets = [0, 5], sizes = [8, 1], strides = [1, 1]} : vector<8x10xf32> to vector<8x1xf32>
    %c4 = arith.constant 4 : index
    %c0_8 = arith.constant 0 : index
    %50 = vector.load %arg3[%c4, %c0_8] : memref<8x256xf32, #tpu.memory_space<vmem>>, vector<1x256xf32>
    %51 = vector.shape_cast %50 : vector<1x256xf32> to vector<256xf32>
    %52 = vector.shape_cast %51 : vector<256xf32> to vector<1x256xf32>
    %53 = vector.broadcast %52 : vector<1x256xf32> to vector<8x256xf32>
    %54 = arith.mulf %48, %53 : vector<8x256xf32>
    %55 = vector.broadcast %49 : vector<8x1xf32> to vector<8x256xf32>
    %56 = arith.mulf %55, %54 : vector<8x256xf32>
    %57 = arith.addf %47, %56 : vector<8x256xf32>
    %c241_i32 = arith.constant 241 : i32
    %58 = tpu.dynamic_rotate %0 by %c241_i32 dim 1 : vector<8x256xf32>, i32 -> vector<8x256xf32>
    %59 = vector.extract_strided_slice %1 {offsets = [0, 6], sizes = [8, 1], strides = [1, 1]} : vector<8x10xf32> to vector<8x1xf32>
    %c5 = arith.constant 5 : index
    %c0_9 = arith.constant 0 : index
    %60 = vector.load %arg3[%c5, %c0_9] : memref<8x256xf32, #tpu.memory_space<vmem>>, vector<1x256xf32>
    %61 = vector.shape_cast %60 : vector<1x256xf32> to vector<256xf32>
    %62 = vector.shape_cast %61 : vector<256xf32> to vector<1x256xf32>
    %63 = vector.broadcast %62 : vector<1x256xf32> to vector<8x256xf32>
    %64 = arith.mulf %58, %63 : vector<8x256xf32>
    %65 = vector.broadcast %59 : vector<8x1xf32> to vector<8x256xf32>
    %66 = arith.mulf %65, %64 : vector<8x256xf32>
    %67 = arith.addf %57, %66 : vector<8x256xf32>
    %c240_i32 = arith.constant 240 : i32
    %68 = tpu.dynamic_rotate %0 by %c240_i32 dim 1 : vector<8x256xf32>, i32 -> vector<8x256xf32>
    %69 = vector.extract_strided_slice %1 {offsets = [0, 7], sizes = [8, 1], strides = [1, 1]} : vector<8x10xf32> to vector<8x1xf32>
    %c6 = arith.constant 6 : index
    %c0_10 = arith.constant 0 : index
    %70 = vector.load %arg3[%c6, %c0_10] : memref<8x256xf32, #tpu.memory_space<vmem>>, vector<1x256xf32>
    %71 = vector.shape_cast %70 : vector<1x256xf32> to vector<256xf32>
    %72 = vector.shape_cast %71 : vector<256xf32> to vector<1x256xf32>
    %73 = vector.broadcast %72 : vector<1x256xf32> to vector<8x256xf32>
    %74 = arith.mulf %68, %73 : vector<8x256xf32>
    %75 = vector.broadcast %69 : vector<8x1xf32> to vector<8x256xf32>
    %76 = arith.mulf %75, %74 : vector<8x256xf32>
    %77 = arith.addf %67, %76 : vector<8x256xf32>
    %c239_i32 = arith.constant 239 : i32
    %78 = tpu.dynamic_rotate %0 by %c239_i32 dim 1 : vector<8x256xf32>, i32 -> vector<8x256xf32>
    %79 = vector.extract_strided_slice %1 {offsets = [0, 8], sizes = [8, 1], strides = [1, 1]} : vector<8x10xf32> to vector<8x1xf32>
    %c7 = arith.constant 7 : index
    %c0_11 = arith.constant 0 : index
    %80 = vector.load %arg3[%c7, %c0_11] : memref<8x256xf32, #tpu.memory_space<vmem>>, vector<1x256xf32>
    %81 = vector.shape_cast %80 : vector<1x256xf32> to vector<256xf32>
    %82 = vector.shape_cast %81 : vector<256xf32> to vector<1x256xf32>
    %83 = vector.broadcast %82 : vector<1x256xf32> to vector<8x256xf32>
    %84 = arith.mulf %78, %83 : vector<8x256xf32>
    %85 = vector.broadcast %79 : vector<8x1xf32> to vector<8x256xf32>
    %86 = arith.mulf %85, %84 : vector<8x256xf32>
    %87 = arith.addf %77, %86 : vector<8x256xf32>
    %88 = arith.maximumf %0, %87 : vector<8x256xf32>
    %c0_12 = arith.constant 0 : index
    %c0_13 = arith.constant 0 : index
    %89 = vector.load %arg4[%c0_12, %c0_13] : memref<8x256xf32, #tpu.memory_space<vmem>>, vector<8x256xf32>
    tpu.vector_store %arg4[%c0_12, %c0_13], %88 {strides = array<i32>} : memref<8x256xf32, #tpu.memory_space<vmem>>, vector<8x256xf32>,
    return
  }
  func.func @transform_0(%arg0: i32) -> (i32, i32) {
    %c0_i32 = arith.constant 0 : i32
    %c0_i32_0 = arith.constant 0 : i32
    return %arg0, %c0_i32 : i32, i32
  }
  func.func @transform_1(%arg0: i32) -> (i32, i32) {
    %c0_i32 = arith.constant 0 : i32
    %c0_i32_0 = arith.constant 0 : i32
    return %arg0, %c0_i32 : i32, i32
  }
  func.func @transform_2(%arg0: i32) -> (i32, i32) {
    %c0_i32 = arith.constant 0 : i32
    %c0_i32_0 = arith.constant 0 : i32
    %c0_i32_1 = arith.constant 0 : i32
    return %c0_i32, %c0_i32_0 : i32, i32
  }
  func.func @transform_3(%arg0: i32) -> (i32, i32) {
    %c0_i32 = arith.constant 0 : i32
    %c0_i32_0 = arith.constant 0 : i32
    return %arg0, %c0_i32 : i32, i32
  }
}

</mosaic_0001>

<llo_original>
// kernel: tpu_custom_call.1
$region0: #{tpu_custom_call.1}
  #allocation0 [shape = 'u32[]', space=smem, size = 0x4, offset = 0x4, fixed_abs, tag = 'smem constant byte address 0x4 - core index']
  #allocation1 [shape = 'u32[72,128]{1,0:T(1,128)}', space=vmem, size = 0x9000, scoped, tag = 'internal scratch']
  %s0 = inlined_call_operand.hbm [shape: f32[8,256], index: 0, kind: input, shape index: {}]
  %s1 = inlined_call_operand.hbm [shape: f32[8,10], index: 1, kind: input, shape index: {}]
  %s2 = inlined_call_operand.hbm [shape: f32[8,256], index: 2, kind: input, shape index: {}]
  %s3 = inlined_call_operand.hbm [shape: f32[8,256], index: 3, kind: output, shape index: {}]
  %s4 = sld [smem:[#allocation0]]
  $region34: #{tpu_custom_call.1} parent=0
    _
  %s6 = ssub.s32 1, %s4
  %s7 = scalar_select 0, %s6, %s4
  $region1: #{tpu_custom_call.1} parent=0
    #allocation2 [shape = 'u8[8192]{0}', space=vmem, size = 0x2000, scoped, tag = 'input window, operand 0, single buffered']
    #allocation3 [shape = 's32[1]{0}', space=sflag, size = 0x4, scoped, tag = 'scoped memory for tpu_custom_call.1']
    #allocation4 [shape = 's32[1]{0}', space=sflag, size = 0x4, scoped, tag = 'scoped memory for tpu_custom_call.1']
    #allocation5 [shape = 'u8[4096]{0}', space=vmem, size = 0x1000, scoped, tag = 'input window, operand 1, single buffered']
    #allocation6 [shape = 's32[1]{0}', space=sflag, size = 0x4, scoped, tag = 'scoped memory for tpu_custom_call.1']
    #allocation7 [shape = 'u8[8192]{0}', space=vmem, size = 0x2000, scoped, tag = 'input window, operand 2, single buffered']
    #allocation8 [shape = 'u8[8192]{0}', space=vmem, size = 0x2000, scoped, tag = 'output window, operand 0, single buffered']
    %8 = vsyncpa [#allocation3], 0
    %9 = vsyncpa [#allocation6], 0
    %10 = vsyncpa [#allocation4], 0
    // Predicated region
    $region2: #{tpu_custom_call.1} parent=1 // pred_check
      _
    $region3: #{tpu_custom_call.1} parent=1 // pred_check_branch
      %12 = sbr.rel (0) target = $region5
    $region4: #{tpu_custom_call.1} parent=1 // pred_region
      %14 = vsyncadd [#allocation3], 0
      %s16 = sshll.u32 %s0, 4
      %s17 = int_to_ptr.hbm [resolvable:$true] %s16
      %s18 = sshll.u32 [#allocation2], 4
      %s19 = int_to_ptr.vmem [resolvable:$true] %s18
      %21 = dma.hbm_to_vmem [thread:$0]  %s17, 256, %s19, [#allocation3]
    $region5: #{tpu_custom_call.1} parent=1 // pred_fallthru
      _
    // Predicated region
    $region6: #{tpu_custom_call.1} parent=1 // pred_check
      _
    $region7: #{tpu_custom_call.1} parent=1 // pred_check_branch
      %23 = sbr.rel (0) target = $region9
    $region8: #{tpu_custom_call.1} parent=1 // pred_region
      %25 = vsyncadd [#allocation6], 0
      %s27 = sshll.u32 %s1, 4
      %s28 = int_to_ptr.hbm [resolvable:$true] %s27
      %s29 = sshll.u32 [#allocation5], 4
      %s30 = int_to_ptr.vmem [resolvable:$true] %s29
      %32 = dma.hbm_to_vmem [thread:$0]  %s28, 128, %s30, [#allocation6]
    $region9: #{tpu_custom_call.1} parent=1 // pred_fallthru
      _
    // Predicated region
    $region10: #{tpu_custom_call.1} parent=1 // pred_check
      _
    $region11: #{tpu_custom_call.1} parent=1 // pred_check_branch
      %34 = sbr.rel (0) target = $region13
    $region12: #{tpu_custom_call.1} parent=1 // pred_region
      %36 = vsyncadd [#allocation6], 0
      %s38 = sshll.u32 %s2, 4
      %s39 = int_to_ptr.hbm [resolvable:$true] %s38
      %s40 = sshll.u32 [#allocation7], 4
      %s41 = int_to_ptr.vmem [resolvable:$true] %s40
      %43 = dma.hbm_to_vmem [thread:$0]  %s39, 256, %s41, [#allocation6]
    $region13: #{tpu_custom_call.1} parent=1 // pred_fallthru
      _
    // Predicated region
    $region14: #{tpu_custom_call.1} parent=1 // pred_check
      _
    $region15: #{tpu_custom_call.1} parent=1 // pred_check_branch
      %45 = sbr.rel (0) target = $region17
    $region16: #{tpu_custom_call.1} parent=1 // pred_region
      %47 = dma.done [#allocation3], 256
    $region17: #{tpu_custom_call.1} parent=1 // pred_fallthru
      _
    // Predicated region
    $region18: #{tpu_custom_call.1} parent=1 // pred_check
      _
    $region19: #{tpu_custom_call.1} parent=1 // pred_check_branch
      %49 = sbr.rel (0) target = $region21
    $region20: #{tpu_custom_call.1} parent=1 // pred_region
      %51 = dma.done [#allocation6], 128
    $region21: #{tpu_custom_call.1} parent=1 // pred_fallthru
      _
    // Predicated region
    $region22: #{tpu_custom_call.1} parent=1 // pred_check
      _
    $region23: #{tpu_custom_call.1} parent=1 // pred_check_branch
      %53 = sbr.rel (0) target = $region25
    $region24: #{tpu_custom_call.1} parent=1 // pred_region
      %55 = dma.done [#allocation6], 256
    $region25: #{tpu_custom_call.1} parent=1 // pred_fallthru
      _
    %v56 = vld [vmem:[#allocation2] sm:$0xff]
    %v57 = vld [vmem:[#allocation2 + $0x8] sm:$0xff]
    %v58 = vld [vmem:[#allocation5] sm:$0xff]
    %60 = vset.pattern.permute.xlu0 4
    %61 = vperm.xlu0 %60, %v58
    %v62 = vpop.permute.xlu0 %61
    %v64 = vmul.f32 %v62, %v56
    %v65 = vmul.f32 %v62, %v57
    %66 = vset.pattern.permute.xlu0 9
    %67 = vperm.xlu0 %66, %v58
    %v68 = vpop.permute.xlu0 %67
    %v70 = vadd.f32 %v68, %v64
    %v71 = vadd.f32 %v68, %v65
    %72 = vrot.lane.b32.xlu0 %v56, 17
    %v73 = vpop.permute.xlu0 %72
    %74 = vrot.lane.b32.xlu0 %v57, 17
    %v75 = vpop.permute.xlu0 %74
    %v76 = vlaneseq
    %v77 = vand.u32 %v76, 127
    %vm78 = vcmp.lt.s32.totalorder %v77, 17
    %v79 = vsel %vm78, %v73, %v75
    %v80 = vsel %vm78, %v75, %v73
    %v81 = vld [vmem:[#allocation7] ss:$8 sm:$0x3]
    %v83 = vperm.slane %v81, 0
    %v84 = vperm.slane %v81, 1
    %v87 = vmul.f32 %v80, %v83
    %v88 = vmul.f32 %v79, %v84
    %89 = vset.pattern.permute.xlu0 0
    %90 = vperm.xlu0 %89, %v58
    %v91 = vpop.permute.xlu0 %90
    %v93 = vmul.f32 %v91, %v87
    %v94 = vmul.f32 %v91, %v88
    %v95 = vadd.f32 %v70, %v93
    %v96 = vadd.f32 %v71, %v94
    %97 = vrot.lane.b32.xlu0 %v56, 16
    %v98 = vpop.permute.xlu0 %97
    %99 = vrot.lane.b32.xlu0 %v57, 16
    %v100 = vpop.permute.xlu0 %99
    %vm101 = vcmp.lt.s32.totalorder %v77, 16
    %v102 = vsel %vm101, %v98, %v100
    %v103 = vsel %vm101, %v100, %v98
    %s104 = scalar_lea.vmem [#allocation7], 1
    %v105 = vld [vmem:[%s104] ss:$8 sm:$0x3]
    %v107 = vperm.slane %v105, 0
    %v108 = vperm.slane %v105, 1
    %v111 = vmul.f32 %v103, %v107
    %v112 = vmul.f32 %v102, %v108
    %113 = vset.pattern.permute.xlu0 1
    %114 = vperm.xlu0 %113, %v58
    %v115 = vpop.permute.xlu0 %114
    %v117 = vmul.f32 %v115, %v111
    %v118 = vmul.f32 %v115, %v112
    %v119 = vadd.f32 %v95, %v117
    %v120 = vadd.f32 %v96, %v118
    %121 = vrot.lane.b32.xlu0 %v56, 15
    %v122 = vpop.permute.xlu0 %121
    %123 = vrot.lane.b32.xlu0 %v57, 15
    %v124 = vpop.permute.xlu0 %123
    %vm125 = vcmp.lt.s32.totalorder %v77, 15
    %v126 = vsel %vm125, %v122, %v124
    %v127 = vsel %vm125, %v124, %v122
    %s128 = scalar_lea.vmem [#allocation7], 2
    %v129 = vld [vmem:[%s128] ss:$8 sm:$0x3]
    %v131 = vperm.slane %v129, 0
    %v132 = vperm.slane %v129, 1
    %v135 = vmul.f32 %v127, %v131
    %v136 = vmul.f32 %v126, %v132
    %137 = vset.pattern.permute.xlu0 2
    %138 = vperm.xlu0 %137, %v58
    %v139 = vpop.permute.xlu0 %138
    %v141 = vmul.f32 %v139, %v135
    %v142 = vmul.f32 %v139, %v136
    %v143 = vadd.f32 %v119, %v141
    %v144 = vadd.f32 %v120, %v142
    %145 = vrot.lane.b32.xlu0 %v56, 1
    %v146 = vpop.permute.xlu0 %145
    %147 = vrot.lane.b32.xlu0 %v57, 1
    %v148 = vpop.permute.xlu0 %147
    %vm149 = vcmp.lt.s32.totalorder %v77, 1
    %v150 = vsel %vm149, %v146, %v148
    %v151 = vsel %vm149, %v148, %v146
    %s152 = scalar_lea.vmem [#allocation7], 3
    %v153 = vld [vmem:[%s152] ss:$8 sm:$0x3]
    %v155 = vperm.slane %v153, 0
    %v156 = vperm.slane %v153, 1
    %v159 = vmul.f32 %v151, %v155
    %v160 = vmul.f32 %v150, %v156
    %161 = vset.pattern.permute.xlu0 3
    %162 = vperm.xlu0 %161, %v58
    %v163 = vpop.permute.xlu0 %162
    %v165 = vmul.f32 %v163, %v159
    %v166 = vmul.f32 %v163, %v160
    %v167 = vadd.f32 %v143, %v165
    %v168 = vadd.f32 %v144, %v166
    %169 = vrot.lane.b32.xlu0 %v56, 127
    %v170 = vpop.permute.xlu0 %169
    %171 = vrot.lane.b32.xlu0 %v57, 127
    %v172 = vpop.permute.xlu0 %171
    %vm173 = vcmp.lt.s32.totalorder %v77, 127
    %v174 = vsel %vm173, %v170, %v172
    %v175 = vsel %vm173, %v172, %v170
    %s176 = scalar_lea.vmem [#allocation7], 4
    %v177 = vld [vmem:[%s176] ss:$8 sm:$0x3]
    %v179 = vperm.slane %v177, 0
    %v180 = vperm.slane %v177, 1
    %v183 = vmul.f32 %v174, %v179
    %v184 = vmul.f32 %v175, %v180
    %185 = vset.pattern.permute.xlu0 5
    %186 = vperm.xlu0 %185, %v58
    %v187 = vpop.permute.xlu0 %186
    %v189 = vmul.f32 %v187, %v183
    %v190 = vmul.f32 %v187, %v184
    %v191 = vadd.f32 %v167, %v189
    %v192 = vadd.f32 %v168, %v190
    %193 = vrot.lane.b32.xlu0 %v56, 113
    %v194 = vpop.permute.xlu0 %193
    %195 = vrot.lane.b32.xlu0 %v57, 113
    %v196 = vpop.permute.xlu0 %195
    %vm197 = vcmp.lt.s32.totalorder %v77, 113
    %v198 = vsel %vm197, %v194, %v196
    %v199 = vsel %vm197, %v196, %v194
    %s200 = scalar_lea.vmem [#allocation7], 5
    %v201 = vld [vmem:[%s200] ss:$8 sm:$0x3]
    %v203 = vperm.slane %v201, 0
    %v204 = vperm.slane %v201, 1
    %v207 = vmul.f32 %v198, %v203
    %v208 = vmul.f32 %v199, %v204
    %209 = vset.pattern.permute.xlu0 6
    %210 = vperm.xlu0 %209, %v58
    %v211 = vpop.permute.xlu0 %210
    %v213 = vmul.f32 %v211, %v207
    %v214 = vmul.f32 %v211, %v208
    %v215 = vadd.f32 %v191, %v213
    %v216 = vadd.f32 %v192, %v214
    %217 = vrot.lane.b32.xlu0 %v56, 112
    %v218 = vpop.permute.xlu0 %217
    %219 = vrot.lane.b32.xlu0 %v57, 112
    %v220 = vpop.permute.xlu0 %219
    %vm221 = vcmp.lt.s32.totalorder %v77, 112
    %v222 = vsel %vm221, %v218, %v220
    %v223 = vsel %vm221, %v220, %v218
    %s224 = scalar_lea.vmem [#allocation7], 6
    %v225 = vld [vmem:[%s224] ss:$8 sm:$0x3]
    %v227 = vperm.slane %v225, 0
    %v228 = vperm.slane %v225, 1
    %v231 = vmul.f32 %v222, %v227
    %v232 = vmul.f32 %v223, %v228
    %233 = vset.pattern.permute.xlu0 7
    %234 = vperm.xlu0 %233, %v58
    %v235 = vpop.permute.xlu0 %234
    %v237 = vmul.f32 %v235, %v231
    %v238 = vmul.f32 %v235, %v232
    %v239 = vadd.f32 %v215, %v237
    %v240 = vadd.f32 %v216, %v238
    %241 = vrot.lane.b32.xlu0 %v56, 111
    %v242 = vpop.permute.xlu0 %241
    %243 = vrot.lane.b32.xlu0 %v57, 111
    %v244 = vpop.permute.xlu0 %243
    %vm245 = vcmp.lt.s32.totalorder %v77, 111
    %v246 = vsel %vm245, %v242, %v244
    %v247 = vsel %vm245, %v244, %v242
    %s248 = scalar_lea.vmem [#allocation7], 7
    %v249 = vld [vmem:[%s248] ss:$8 sm:$0x3]
    %v251 = vperm.slane %v249, 0
    %v252 = vperm.slane %v249, 1
    %v255 = vmul.f32 %v246, %v251
    %v256 = vmul.f32 %v247, %v252
    %257 = vset.pattern.permute.xlu0 8
    %258 = vperm.xlu0 %257, %v58
    %v259 = vpop.permute.xlu0 %258
    %v261 = vmul.f32 %v259, %v255
    %v262 = vmul.f32 %v259, %v256
    %v263 = vadd.f32 %v239, %v261
    %v264 = vadd.f32 %v240, %v262
    %v265 = vmax.f32 %v56, %v263
    %v266 = vmax.f32 %v57, %v264
    %267 = vst [vmem:[#allocation8] sm:$0xff] %v265
    %268 = vst [vmem:[#allocation8 + $0x8] sm:$0xff] %v266
    // Predicated region
    $region26: #{tpu_custom_call.1} parent=1 // pred_check
      _
    $region27: #{tpu_custom_call.1} parent=1 // pred_check_branch
      %270 = sbr.rel (0) target = $region29
    $region28: #{tpu_custom_call.1} parent=1 // pred_region
      %272 = vsyncadd [#allocation4], 0
      %s274 = sshll.u32 [#allocation8], 4
      %s275 = int_to_ptr.vmem [resolvable:$true] %s274
      %s276 = sshll.u32 %s3, 4
      %s277 = int_to_ptr.hbm [resolvable:$true] %s276
      %279 = dma.vmem_to_hbm [thread:$0]  %s275, 256, %s277, [#allocation4]
    $region29: #{tpu_custom_call.1} parent=1 // pred_fallthru
      _
    // Predicated region
    $region30: #{tpu_custom_call.1} parent=1 // pred_check
      _
    $region31: #{tpu_custom_call.1} parent=1 // pred_check_branch
      %281 = sbr.rel (0) target = $region33
    $region32: #{tpu_custom_call.1} parent=1 // pred_region
      %283 = dma.done [#allocation4], 256
    $region33: #{tpu_custom_call.1} parent=1 // pred_fallthru
      _
    %284 = vsyncpa [#allocation3], 1
    %285 = vsyncpa [#allocation6], 1
    %286 = vsyncpa [#allocation4], 1

</llo_original>
